<compile_context>
chip_gen: v7x
topology: tpu7x:2x2x1
jax: 0.10.0
libtpu: 0.0.40
codegen_flags: <defaults>
</compile_context>

<pallas_src>
import functools

import jax
import jax.numpy as jnp
from jax.experimental import pallas as pl
from jax.experimental.pallas import tpu as pltpu


_LANE = 128
_SUBLANE = 8


def _round_up(x, m):
    return (x + m - 1) // m * m


def _actor_encoder_kernel(
    x_ref, eps_ref, u_ref,
    wx_ref, eb1_ref, wmulv_ref, bmulv_ref,
    w1z_ref, b1_ref, w2_ref, b2_ref, w3_ref, b3_ref,
    o_ref,
    *, enc_hidden, z_dim, num_outputs, dot_dtype,
):
    """One (tile_b, ...) batch tile of the full ActorEncoder forward."""
    f32 = jnp.float32

    x = x_ref[...]                                   # (tb, input_dim), dot_dtype

    # (1) x goes through the MXU exactly once: fused [enc_w1 | w1_x].
    xw = jnp.dot(x, wx_ref[...], preferred_element_type=f32)
    h = jnp.maximum(xw[:, :enc_hidden] + eb1_ref[...], 0.0)   # VAE encoder hidden
    xw1 = xw[:, enc_hidden:]                                   # x @ w1_x (fc1 partial)

    # (2) fused mu/logvar heads: one dot, slice in-kernel.
    mulv = (jnp.dot(h.astype(dot_dtype), wmulv_ref[...],
                    preferred_element_type=f32) + bmulv_ref[...])
    mu = mulv[:, :z_dim]
    logvar = mulv[:, z_dim:]
    z = mu + jnp.exp(0.5 * logvar) * eps_ref[...].astype(f32)  # reparameterize

    # (3) fc1 = relu(z @ w1_z + x @ w1_x + b1)  -- no in-kernel concat.
    h1 = (jnp.dot(z.astype(dot_dtype), w1z_ref[...], preferred_element_type=f32)
          + xw1 + b1_ref[...])
    h1 = jnp.maximum(h1, 0.0)

    # (4) fc2 + relu
    h2 = (jnp.dot(h1.astype(dot_dtype), w2_ref[...], preferred_element_type=f32)
          + b2_ref[...])
    h2 = jnp.maximum(h2, 0.0)

    # (5) fc3 logits at native num_outputs width (f32).
    logits = (jnp.dot(h2.astype(dot_dtype), w3_ref[...], preferred_element_type=f32)
              + b3_ref[...])

    # act_pd.sample(logits): soft-categorical (Gumbel-softmax) sample, all f32,
    # all at the narrow num_outputs width (u streamed at native width).
    gumbel = -jnp.log(-jnp.log(u_ref[...]))
    y = logits + gumbel
    y = y - jnp.max(y, axis=-1, keepdims=True)
    e = jnp.exp(y)
    denom = jnp.sum(e, axis=-1, keepdims=True)
    r = pl.reciprocal(denom, approx=True)            # EUP slot (off the VPU path)
    r = r * (2.0 - denom * r)                        # one Newton step -> ~1e-7 rel err
    p = (e * r).astype(o_ref.dtype)

    # Lane-dense 128-wide output block: zero the pad lanes, masked-store the
    # real columns.  The HBM writeback DMA stays dense/unmasked.
    o_ref[...] = jnp.zeros(o_ref.shape, o_ref.dtype)
    o_ref[:, :num_outputs] = p


def actor_encoder_forward(x, eps, u, params, *, tile_b=2048,
                          matmul_dtype=jnp.bfloat16):
    """Whole ActorEncoder forward in one batch-tiled Pallas invocation.

    tile_b: target rows per grid step (default 2048 to amortize per-step
    pipeline overhead).  matmul_dtype: dtype of the MXU path (bf16 default for
    v6e/v7x; pass jnp.float32 for an exact-precision path).
    """
    batch, input_dim = x.shape
    z_dim = eps.shape[-1]
    enc_hidden = params["enc_w1"].shape[-1]
    num_units = params["w2"].shape[-1]
    num_outputs = params["w3"].shape[-1]
    out_pad = _round_up(num_outputs, _LANE)          # lane-dense output width

    # --- batch tiling: prefer tiles that divide the (sublane-rounded) batch so
    # no wrapper-side repadding copy is needed; keep >=2 grid steps when the
    # batch allows so both v7x TensorCores get work (v5e/v6e: harmless).
    pb8 = _round_up(batch, _SUBLANE)
    tb = max(_SUBLANE, min(_round_up(tile_b, _SUBLANE), pb8))
    n_steps = pl.cdiv(pb8, tb)
    if n_steps == 1 and pb8 >= 2 * _SUBLANE:
        n_steps = 2
    tb = _round_up(pl.cdiv(pb8, n_steps), _SUBLANE)
    padded_batch = n_steps * tb
    grid = (n_steps,)

    cd = matmul_dtype
    f32 = jnp.float32

    def pad_rows(a, fill=0.0):
        if a.shape[0] == padded_batch:
            return a
        return jnp.pad(a, ((0, padded_batch - a.shape[0]), (0, 0)),
                       constant_values=fill)

    xp = pad_rows(x.astype(cd))
    epsp = pad_rows(eps.astype(cd))
    up = pad_rows(u.astype(f32), fill=0.5)           # native (batch, num_outputs)

    # --- wrapper-side weight packing (static layout plumbing):
    #   wx    = [enc_w1 | w1_x]           -> x through the MXU once
    #   wmulv = [enc_wmu | enc_wlv]       -> fused mu/logvar head
    #   w1_z  = rows of fc1.W multiplying z
    w1 = params["w1"]
    w1_z = w1[:z_dim]
    w1_x = w1[z_dim:]
    wx = jnp.concatenate([params["enc_w1"], w1_x], axis=1).astype(cd)
    wmulv = jnp.concatenate([params["enc_wmu"], params["enc_wlv"]], axis=1).astype(cd)
    bmulv = jnp.concatenate([params["enc_bmu"], params["enc_blv"]], axis=1).astype(f32)

    weights = (
        wx, params["enc_b1"].astype(f32),
        wmulv, bmulv,
        w1_z.astype(cd), params["b1"].astype(f32),
        params["w2"].astype(cd), params["b2"].astype(f32),
        params["w3"].astype(cd), params["b3"].astype(f32),
    )

    # --- BlockSpecs: activations stream one batch tile per grid step (auto
    # double-buffered HBM<->VMEM); weights/biases have a constant index_map so
    # they are fetched once and stay VMEM-resident for the whole grid.
    def act_spec(feat):
        return pl.BlockSpec((tb, feat), lambda i: (i, 0))

    def const_spec(a):
        return pl.BlockSpec(a.shape, lambda i: (0, 0))

    in_specs = ([act_spec(input_dim), act_spec(z_dim), act_spec(num_outputs)]
                + [const_spec(w) for w in weights])
    out_spec = pl.BlockSpec((tb, out_pad), lambda i: (i, 0))

    kernel = functools.partial(
        _actor_encoder_kernel,
        enc_hidden=enc_hidden, z_dim=z_dim,
        num_outputs=num_outputs, dot_dtype=cd)

    # --- advisory cost estimate so XLA schedules the custom call sensibly.
    flops = 2 * padded_batch * (
        input_dim * (enc_hidden + num_units)
        + enc_hidden * 2 * z_dim
        + z_dim * num_units
        + num_units * num_units
        + num_units * num_outputs)
    transcendentals = padded_batch * (z_dim + 3 * num_outputs + 1)
    bytes_accessed = int(
        xp.size * xp.dtype.itemsize
        + epsp.size * epsp.dtype.itemsize
        + up.size * up.dtype.itemsize
        + padded_batch * out_pad * 4
        + sum(int(w.size) * w.dtype.itemsize for w in weights))

    out = pl.pallas_call(
        kernel,
        out_shape=jax.ShapeDtypeStruct((padded_batch, out_pad), jnp.float32),
        grid=grid,
        in_specs=in_specs,
        out_specs=out_spec,
        compiler_params=pltpu.CompilerParams(
            # batch tiles are independent -> shard across v7x's 2 TensorCores
            dimension_semantics=("parallel",),
            # covers v5e's smaller default scoped-VMEM limit at large tile_b;
            # well inside v7x's 64 MiB physical VMEM.
            vmem_limit_bytes=32 * 1024 * 1024),
        cost_estimate=pl.CostEstimate(
            flops=int(flops),
            transcendentals=int(transcendentals),
            bytes_accessed=bytes_accessed),
    )(xp, epsp, up, *weights)

    return out[:batch, :num_outputs]


def _init_params(key, input_dim, z_dim, enc_hidden, num_units, num_outputs):
    """Deterministic synthetic parameters (shapes implied by the module)."""
    ks = jax.random.split(key, 12)

    def lin(kw, kb, fan_in, fan_out):
        bound = 1.0 / jnp.sqrt(fan_in)
        w = jax.random.uniform(kw, (fan_in, fan_out), jnp.float32, -bound, bound)
        b = jax.random.uniform(kb, (1, fan_out), jnp.float32, -bound, bound)
        return w, b

    enc_w1, enc_b1 = lin(ks[0], ks[1], input_dim, enc_hidden)
    enc_wmu, enc_bmu = lin(ks[2], ks[3], enc_hidden, z_dim)
    enc_wlv, enc_blv = lin(ks[4], ks[5], enc_hidden, z_dim)
    w1, b1 = lin(ks[6], ks[7], z_dim + input_dim, num_units)
    w2, b2 = lin(ks[8], ks[9], num_units, num_units)
    w3, b3 = lin(ks[10], ks[11], num_units, num_outputs)

    return dict(
        enc_w1=enc_w1, enc_b1=enc_b1,
        enc_wmu=enc_wmu, enc_bmu=enc_bmu,
        enc_wlv=enc_wlv, enc_blv=enc_blv,
        w1=w1, b1=b1, w2=w2, b2=b2, w3=w3, b3=b3,
    )


def _reference_forward(x, eps, u, params):
    """Pure-JAX reference of the same forward (high-precision f32 dots)."""
    hp = jax.lax.Precision.HIGHEST
    h = jax.nn.relu(jnp.dot(x, params["enc_w1"], precision=hp) + params["enc_b1"])
    mu = jnp.dot(h, params["enc_wmu"], precision=hp) + params["enc_bmu"]
    logvar = jnp.dot(h, params["enc_wlv"], precision=hp) + params["enc_blv"]
    z = mu + jnp.exp(0.5 * logvar) * eps
    zx = jnp.concatenate([z, x], axis=-1)
    h1 = jax.nn.relu(jnp.dot(zx, params["w1"], precision=hp) + params["b1"])
    h2 = jax.nn.relu(jnp.dot(h1, params["w2"], precision=hp) + params["b2"])
    logits = jnp.dot(h2, params["w3"], precision=hp) + params["b3"]
    gumbel = -jnp.log(-jnp.log(u))
    return jax.nn.softmax(logits + gumbel, axis=-1)


if __name__ == "__main__":
    # Small, module-consistent shapes.
    batch = 24
    input_dim = 16      # vae.input_dim (observation dim)
    z_dim = 8           # vae.z_dim
    enc_hidden = 32     # VAE encoder hidden width
    num_units = 32      # nn.Linear hidden width (module default 64; small here)
    num_outputs = 5     # action dim

    # TODO(synk): vae.encode_to_z / act_pd are external modules; their RNG
    # (reparam eps, gumbel uniforms) is generated here from PRNGKey(0) and fed
    # to the kernel rather than drawn inside it.
    root = jax.random.PRNGKey(0)
    k_x, k_eps, k_u, k_p = jax.random.split(root, 4)

    x = jax.random.normal(k_x, (batch, input_dim), jnp.float32)
    eps = jax.random.normal(k_eps, (batch, z_dim), jnp.float32)          # reparam noise
    u = jax.random.uniform(k_u, (batch, num_outputs), jnp.float32,
                           minval=1e-6, maxval=1.0 - 1e-6)               # gumbel uniforms

    params = _init_params(k_p, input_dim, z_dim, enc_hidden, num_units, num_outputs)
    ref = _reference_forward(x, eps, u, params)

    # Exact-precision path (f32 matmuls); tile_b=8 exercises a 3-step
    # pipelined grid with no wrapper-side batch padding.
    out_f32 = jax.block_until_ready(
        actor_encoder_forward(x, eps, u, params, tile_b=8,
                              matmul_dtype=jnp.float32))
    assert out_f32.shape == (batch, num_outputs)
    assert bool(jnp.all(jnp.isfinite(out_f32)))
    assert bool(jnp.allclose(jnp.sum(out_f32, axis=-1), 1.0, atol=1e-5))
    assert bool(jnp.allclose(out_f32, ref, atol=1e-3, rtol=1e-3))

    # Default fast path: bf16 matmul inputs with f32 accumulation (v6e/v7x
    # native), big default tiles, grid forced to 2 steps (v7x megacore).
    out_bf16 = jax.block_until_ready(actor_encoder_forward(x, eps, u, params))
    assert out_bf16.shape == (batch, num_outputs)
    assert bool(jnp.all(jnp.isfinite(out_bf16)))
    assert bool(jnp.allclose(jnp.sum(out_bf16, axis=-1), 1.0, atol=1e-5))
    assert bool(jnp.allclose(out_bf16, ref, atol=2e-2, rtol=2e-2))

    print("KERNEL_OK")
</pallas_src>

<mosaic_0001>
module attributes {stable_mosaic.version = 11 : i64} {
  func.func @_actor_encoder_kernel(%arg0: i32, %arg1: memref<8x16xf32, #tpu.memory_space<vmem>>, %arg2: memref<8x8xf32, #tpu.memory_space<vmem>>, %arg3: memref<8x5xf32, #tpu.memory_space<vmem>>, %arg4: memref<16x64xf32, #tpu.memory_space<vmem>>, %arg5: memref<1x32xf32, #tpu.memory_space<vmem>>, %arg6: memref<32x16xf32, #tpu.memory_space<vmem>>, %arg7: memref<1x16xf32, #tpu.memory_space<vmem>>, %arg8: memref<8x32xf32, #tpu.memory_space<vmem>>, %arg9: memref<1x32xf32, #tpu.memory_space<vmem>>, %arg10: memref<32x32xf32, #tpu.memory_space<vmem>>, %arg11: memref<1x32xf32, #tpu.memory_space<vmem>>, %arg12: memref<32x5xf32, #tpu.memory_space<vmem>>, %arg13: memref<1x5xf32, #tpu.memory_space<vmem>>, %arg14: memref<8x128xf32, #tpu.memory_space<vmem>>) attributes {dimension_semantics = [#tpu.dimension_semantics<parallel>], iteration_bounds = array<i64: 3>, scalar_prefetch = 0 : i64, scratch_operands = 0 : i64, tpu.core_type = #tpu.core_type<tc>, window_params = [{transform_indices = @transform_0, window_bounds = array<i64: 8, 16>}, {transform_indices = @transform_1, window_bounds = array<i64: 8, 8>}, {transform_indices = @transform_2, window_bounds = array<i64: 8, 5>}, {pipeline_mode = #tpu.pipeline_mode<synchronous>, transform_indices = @transform_3, window_bounds = array<i64: 16, 64>}, {pipeline_mode = #tpu.pipeline_mode<synchronous>, transform_indices = @transform_4, window_bounds = array<i64: 1, 32>}, {pipeline_mode = #tpu.pipeline_mode<synchronous>, transform_indices = @transform_5, window_bounds = array<i64: 32, 16>}, {pipeline_mode = #tpu.pipeline_mode<synchronous>, transform_indices = @transform_6, window_bounds = array<i64: 1, 16>}, {pipeline_mode = #tpu.pipeline_mode<synchronous>, transform_indices = @transform_7, window_bounds = array<i64: 8, 32>}, {pipeline_mode = #tpu.pipeline_mode<synchronous>, transform_indices = @transform_8, window_bounds = array<i64: 1, 32>}, {pipeline_mode = #tpu.pipeline_mode<synchronous>, transform_indices = @transform_9, window_bounds = array<i64: 32, 32>}, {pipeline_mode = #tpu.pipeline_mode<synchronous>, transform_indices = @transform_10, window_bounds = array<i64: 1, 32>}, {pipeline_mode = #tpu.pipeline_mode<synchronous>, transform_indices = @transform_11, window_bounds = array<i64: 32, 5>}, {pipeline_mode = #tpu.pipeline_mode<synchronous>, transform_indices = @transform_12, window_bounds = array<i64: 1, 5>}, {transform_indices = @transform_13, window_bounds = array<i64: 8, 128>}]} {
    %c0 = arith.constant 0 : index
    %c0_0 = arith.constant 0 : index
    %0 = vector.load %arg1[%c0, %c0_0] : memref<8x16xf32, #tpu.memory_space<vmem>>, vector<8x16xf32>
    %c0_1 = arith.constant 0 : index
    %c0_2 = arith.constant 0 : index
    %1 = vector.load %arg4[%c0_1, %c0_2] : memref<16x64xf32, #tpu.memory_space<vmem>>, vector<16x64xf32>
    %cst = arith.constant dense<0.000000e+00> : vector<8x64xf32>
    %2 = tpu.matmul %0, %1, %cst {dimension_numbers = #tpu.dot_dimension_numbers<[1], [0], [0], [1], [0, 0, 1, 1], [], []>} : vector<8x16xf32>, vector<16x64xf32>, vector<8x64xf32> -> vector<8x64xf32>
    %3 = vector.extract_strided_slice %2 {offsets = [0, 0], sizes = [8, 32], strides = [1, 1]} : vector<8x64xf32> to vector<8x32xf32>
    %c0_3 = arith.constant 0 : index
    %c0_4 = arith.constant 0 : index
    %4 = vector.load %arg5[%c0_3, %c0_4] : memref<1x32xf32, #tpu.memory_space<vmem>>, vector<1x32xf32>
    %5 = vector.broadcast %4 : vector<1x32xf32> to vector<8x32xf32>
    %6 = arith.addf %3, %5 : vector<8x32xf32>
    %cst_5 = arith.constant 0.000000e+00 : f32
    %7 = vector.broadcast %cst_5 : f32 to vector<8x32xf32>
    %8 = arith.maximumf %6, %7 : vector<8x32xf32>
    %9 = vector.extract_strided_slice %2 {offsets = [0, 32], sizes = [8, 32], strides = [1, 1]} : vector<8x64xf32> to vector<8x32xf32>
    %c0_6 = arith.constant 0 : index
    %c0_7 = arith.constant 0 : index
    %10 = vector.load %arg6[%c0_6, %c0_7] : memref<32x16xf32, #tpu.memory_space<vmem>>, vector<32x16xf32>
    %cst_8 = arith.constant dense<0.000000e+00> : vector<8x16xf32>
    %11 = tpu.matmul %8, %10, %cst_8 {dimension_numbers = #tpu.dot_dimension_numbers<[1], [0], [0], [1], [0, 0, 1, 1], [], []>} : vector<8x32xf32>, vector<32x16xf32>, vector<8x16xf32> -> vector<8x16xf32>
    %c0_9 = arith.constant 0 : index
    %c0_10 = arith.constant 0 : index
    %12 = vector.load %arg7[%c0_9, %c0_10] : memref<1x16xf32, #tpu.memory_space<vmem>>, vector<1x16xf32>
    %13 = vector.broadcast %12 : vector<1x16xf32> to vector<8x16xf32>
    %14 = arith.addf %11, %13 : vector<8x16xf32>
    %15 = vector.extract_strided_slice %14 {offsets = [0, 0], sizes = [8, 8], strides = [1, 1]} : vector<8x16xf32> to vector<8x8xf32>
    %16 = vector.extract_strided_slice %14 {offsets = [0, 8], sizes = [8, 8], strides = [1, 1]} : vector<8x16xf32> to vector<8x8xf32>
    %cst_11 = arith.constant 5.000000e-01 : f32
    %17 = vector.broadcast %cst_11 : f32 to vector<8x8xf32>
    %18 = arith.mulf %17, %16 : vector<8x8xf32>
    %19 = math.exp %18 : vector<8x8xf32>
    %c0_12 = arith.constant 0 : index
    %c0_13 = arith.constant 0 : index
    %20 = vector.load %arg2[%c0_12, %c0_13] : memref<8x8xf32, #tpu.memory_space<vmem>>, vector<8x8xf32>
    %21 = arith.mulf %19, %20 : vector<8x8xf32>
    %22 = arith.addf %15, %21 : vector<8x8xf32>
    %c0_14 = arith.constant 0 : index
    %c0_15 = arith.constant 0 : index
    %23 = vector.load %arg8[%c0_14, %c0_15] : memref<8x32xf32, #tpu.memory_space<vmem>>, vector<8x32xf32>
    %cst_16 = arith.constant dense<0.000000e+00> : vector<8x32xf32>
    %24 = tpu.matmul %22, %23, %cst_16 {dimension_numbers = #tpu.dot_dimension_numbers<[1], [0], [0], [1], [0, 0, 1, 1], [], []>} : vector<8x8xf32>, vector<8x32xf32>, vector<8x32xf32> -> vector<8x32xf32>
    %25 = arith.addf %24, %9 : vector<8x32xf32>
    %c0_17 = arith.constant 0 : index
    %c0_18 = arith.constant 0 : index
    %26 = vector.load %arg9[%c0_17, %c0_18] : memref<1x32xf32, #tpu.memory_space<vmem>>, vector<1x32xf32>
    %27 = vector.broadcast %26 : vector<1x32xf32> to vector<8x32xf32>
    %28 = arith.addf %25, %27 : vector<8x32xf32>
    %cst_19 = arith.constant 0.000000e+00 : f32
    %29 = vector.broadcast %cst_19 : f32 to vector<8x32xf32>
    %30 = arith.maximumf %28, %29 : vector<8x32xf32>
    %c0_20 = arith.constant 0 : index
    %c0_21 = arith.constant 0 : index
    %31 = vector.load %arg10[%c0_20, %c0_21] : memref<32x32xf32, #tpu.memory_space<vmem>>, vector<32x32xf32>
    %cst_22 = arith.constant dense<0.000000e+00> : vector<8x32xf32>
    %32 = tpu.matmul %30, %31, %cst_22 {dimension_numbers = #tpu.dot_dimension_numbers<[1], [0], [0], [1], [0, 0, 1, 1], [], []>} : vector<8x32xf32>, vector<32x32xf32>, vector<8x32xf32> -> vector<8x32xf32>
    %c0_23 = arith.constant 0 : index
    %c0_24 = arith.constant 0 : index
    %33 = vector.load %arg11[%c0_23, %c0_24] : memref<1x32xf32, #tpu.memory_space<vmem>>, vector<1x32xf32>
    %34 = vector.broadcast %33 : vector<1x32xf32> to vector<8x32xf32>
    %35 = arith.addf %32, %34 : vector<8x32xf32>
    %cst_25 = arith.constant 0.000000e+00 : f32
    %36 = vector.broadcast %cst_25 : f32 to vector<8x32xf32>
    %37 = arith.maximumf %35, %36 : vector<8x32xf32>
    %c0_26 = arith.constant 0 : index
    %c0_27 = arith.constant 0 : index
    %38 = vector.load %arg12[%c0_26, %c0_27] : memref<32x5xf32, #tpu.memory_space<vmem>>, vector<32x5xf32>
    %cst_28 = arith.constant dense<0.000000e+00> : vector<8x5xf32>
    %39 = tpu.matmul %37, %38, %cst_28 {dimension_numbers = #tpu.dot_dimension_numbers<[1], [0], [0], [1], [0, 0, 1, 1], [], []>} : vector<8x32xf32>, vector<32x5xf32>, vector<8x5xf32> -> vector<8x5xf32>
    %c0_29 = arith.constant 0 : index
    %c0_30 = arith.constant 0 : index
    %40 = vector.load %arg13[%c0_29, %c0_30] : memref<1x5xf32, #tpu.memory_space<vmem>>, vector<1x5xf32>
    %41 = vector.broadcast %40 : vector<1x5xf32> to vector<8x5xf32>
    %42 = arith.addf %39, %41 : vector<8x5xf32>
    %c0_31 = arith.constant 0 : index
    %c0_32 = arith.constant 0 : index
    %43 = vector.load %arg3[%c0_31, %c0_32] : memref<8x5xf32, #tpu.memory_space<vmem>>, vector<8x5xf32>
    %44 = math.log %43 : vector<8x5xf32>
    %cst_33 = arith.constant 0.000000e+00 : f32
    %45 = vector.broadcast %cst_33 : f32 to vector<8x5xf32>
    %46 = arith.subf %45, %44 : vector<8x5xf32>
    %47 = math.log %46 : vector<8x5xf32>
    %cst_34 = arith.constant 0.000000e+00 : f32
    %48 = vector.broadcast %cst_34 : f32 to vector<8x5xf32>
    %49 = arith.subf %48, %47 : vector<8x5xf32>
    %50 = arith.addf %42, %49 : vector<8x5xf32>
    %cst_35 = arith.constant dense<0xFF800000> : vector<8xf32>
    %51 = vector.multi_reduction <maximumf>, %50, %cst_35 [1] : vector<8x5xf32> to vector<8xf32>
    %52 = vector.shape_cast %51 : vector<8xf32> to vector<8x1xf32>
    %53 = vector.broadcast %52 : vector<8x1xf32> to vector<8x5xf32>
    %54 = arith.subf %50, %53 : vector<8x5xf32>
    %55 = math.exp %54 : vector<8x5xf32>
    %cst_36 = arith.constant dense<0.000000e+00> : vector<8xf32>
    %56 = vector.multi_reduction <add>, %55, %cst_36 [1] : vector<8x5xf32> to vector<8xf32>
    %57 = vector.shape_cast %56 : vector<8xf32> to vector<8x1xf32>
    %58 = tpu.reciprocal %57 {approx = true} : vector<8x1xf32> -> vector<8x1xf32>
    %59 = arith.mulf %57, %58 : vector<8x1xf32>
    %cst_37 = arith.constant 2.000000e+00 : f32
    %60 = vector.broadcast %cst_37 : f32 to vector<8x1xf32>
    %61 = arith.subf %60, %59 : vector<8x1xf32>
    %62 = arith.mulf %58, %61 : vector<8x1xf32>
    %63 = vector.broadcast %62 : vector<8x1xf32> to vector<8x5xf32>
    %64 = arith.mulf %55, %63 : vector<8x5xf32>
    %cst_38 = arith.constant 0.000000e+00 : f32
    %65 = vector.broadcast %cst_38 : f32 to vector<8x128xf32>
    %c0_39 = arith.constant 0 : index
    %c0_40 = arith.constant 0 : index
    %66 = vector.load %arg14[%c0_39, %c0_40] : memref<8x128xf32, #tpu.memory_space<vmem>>, vector<8x128xf32>
    tpu.vector_store %arg14[%c0_39, %c0_40], %65 {strides = array<i32>} : memref<8x128xf32, #tpu.memory_space<vmem>>, vector<8x128xf32>,
    %c0_41 = arith.constant 0 : index
    %c0_42 = arith.constant 0 : index
    %67 = vector.load %arg14[%c0_41, %c0_42] : memref<8x128xf32, #tpu.memory_space<vmem>>, vector<8x5xf32>
    tpu.vector_store %arg14[%c0_41, %c0_42], %64 {strides = array<i32>} : memref<8x128xf32, #tpu.memory_space<vmem>>, vector<8x5xf32>,
    return
  }
  func.func @transform_0(%arg0: i32) -> (i32, i32) {
    %c0_i32 = arith.constant 0 : i32
    %c0_i32_0 = arith.constant 0 : i32
    return %arg0, %c0_i32 : i32, i32
  }
  func.func @transform_1(%arg0: i32) -> (i32, i32) {
    %c0_i32 = arith.constant 0 : i32
    %c0_i32_0 = arith.constant 0 : i32
    return %arg0, %c0_i32 : i32, i32
  }
  func.func @transform_2(%arg0: i32) -> (i32, i32) {
    %c0_i32 = arith.constant 0 : i32
    %c0_i32_0 = arith.constant 0 : i32
    return %arg0, %c0_i32 : i32, i32
  }
  func.func @transform_3(%arg0: i32) -> (i32, i32) {
    %c0_i32 = arith.constant 0 : i32
    %c0_i32_0 = arith.constant 0 : i32
    %c0_i32_1 = arith.constant 0 : i32
    return %c0_i32, %c0_i32_0 : i32, i32
  }
  func.func @transform_4(%arg0: i32) -> (i32, i32) {
    %c0_i32 = arith.constant 0 : i32
    %c0_i32_0 = arith.constant 0 : i32
    %c0_i32_1 = arith.constant 0 : i32
    return %c0_i32, %c0_i32_0 : i32, i32
  }
  func.func @transform_5(%arg0: i32) -> (i32, i32) {
    %c0_i32 = arith.constant 0 : i32
    %c0_i32_0 = arith.constant 0 : i32
    %c0_i32_1 = arith.constant 0 : i32
    return %c0_i32, %c0_i32_0 : i32, i32
  }
  func.func @transform_6(%arg0: i32) -> (i32, i32) {
    %c0_i32 = arith.constant 0 : i32
    %c0_i32_0 = arith.constant 0 : i32
    %c0_i32_1 = arith.constant 0 : i32
    return %c0_i32, %c0_i32_0 : i32, i32
  }
  func.func @transform_7(%arg0: i32) -> (i32, i32) {
    %c0_i32 = arith.constant 0 : i32
    %c0_i32_0 = arith.constant 0 : i32
    %c0_i32_1 = arith.constant 0 : i32
    return %c0_i32, %c0_i32_0 : i32, i32
  }
  func.func @transform_8(%arg0: i32) -> (i32, i32) {
    %c0_i32 = arith.constant 0 : i32
    %c0_i32_0 = arith.constant 0 : i32
    %c0_i32_1 = arith.constant 0 : i32
    return %c0_i32, %c0_i32_0 : i32, i32
  }
  func.func @transform_9(%arg0: i32) -> (i32, i32) {
    %c0_i32 = arith.constant 0 : i32
    %c0_i32_0 = arith.constant 0 : i32
    %c0_i32_1 = arith.constant 0 : i32
    return %c0_i32, %c0_i32_0 : i32, i32
  }
  func.func @transform_10(%arg0: i32) -> (i32, i32) {
    %c0_i32 = arith.constant 0 : i32
    %c0_i32_0 = arith.constant 0 : i32
    %c0_i32_1 = arith.constant 0 : i32
    return %c0_i32, %c0_i32_0 : i32, i32
  }
  func.func @transform_11(%arg0: i32) -> (i32, i32) {
    %c0_i32 = arith.constant 0 : i32
    %c0_i32_0 = arith.constant 0 : i32
    %c0_i32_1 = arith.constant 0 : i32
    return %c0_i32, %c0_i32_0 : i32, i32
  }
  func.func @transform_12(%arg0: i32) -> (i32, i32) {
    %c0_i32 = arith.constant 0 : i32
    %c0_i32_0 = arith.constant 0 : i32
    %c0_i32_1 = arith.constant 0 : i32
    return %c0_i32, %c0_i32_0 : i32, i32
  }
  func.func @transform_13(%arg0: i32) -> (i32, i32) {
    %c0_i32 = arith.constant 0 : i32
    %c0_i32_0 = arith.constant 0 : i32
    return %arg0, %c0_i32 : i32, i32
  }
}

</mosaic_0001>

<llo_original>
// kernel: tpu_custom_call.1
$region0: #{tpu_custom_call.1}
  #allocation0 [shape = 'u32[]', space=smem, size = 0x4, offset = 0x4, fixed_abs, tag = 'smem constant byte address 0x4 - core index']
  #allocation1 [shape = 'u32[144,128]{1,0:T(1,128)}', space=vmem, size = 0x12000, scoped, tag = 'internal scratch']
  %s0 = inlined_call_operand.vmem [shape: f32[24,16], index: 0, kind: input, shape index: {}]
  %s1 = inlined_call_operand.vmem [shape: f32[24,8], index: 1, kind: input, shape index: {}]
  %s2 = inlined_call_operand.vmem [shape: f32[24,5], index: 2, kind: input, shape index: {}]
  %s3 = inlined_call_operand.vmem [shape: f32[16,64], index: 3, kind: input, shape index: {}]
  %s4 = inlined_call_operand.vmem [shape: f32[1,32], index: 4, kind: input, shape index: {}]
  %s5 = inlined_call_operand.vmem [shape: f32[32,16], index: 5, kind: input, shape index: {}]
  %s6 = inlined_call_operand.vmem [shape: f32[1,16], index: 6, kind: input, shape index: {}]
  %s7 = inlined_call_operand.vmem [shape: f32[8,32], index: 7, kind: input, shape index: {}]
  %s8 = inlined_call_operand.vmem [shape: f32[1,32], index: 8, kind: input, shape index: {}]
  %s9 = inlined_call_operand.vmem [shape: f32[32,32], index: 9, kind: input, shape index: {}]
  %s10 = inlined_call_operand.vmem [shape: f32[1,32], index: 10, kind: input, shape index: {}]
  %s11 = inlined_call_operand.vmem [shape: f32[32,5], index: 11, kind: input, shape index: {}]
  %s12 = inlined_call_operand.vmem [shape: f32[1,5], index: 12, kind: input, shape index: {}]
  %s13 = inlined_call_operand.hbm [shape: f32[24,128], index: 13, kind: output, shape index: {}]
  %s14 = sld [smem:[#allocation0]]
  $region85: #{tpu_custom_call.1} parent=0
    _
  %s16 = ssub.s32 1, %s14
  %s17 = scalar_select 0, %s16, %s14
  $region1: #{tpu_custom_call.1} parent=0
    #allocation2 [shape = 'u8[8192]{0}', space=vmem, size = 0x2000, scoped, tag = 'output window, operand 0']
    #allocation3 [shape = 's32[2]{0}', space=sflag, size = 0x8, scoped, tag = 'scoped memory for tpu_custom_call.1']
    %18 = vsyncpa [#allocation3], 0
    %s19 = scalar_lea.sflag [#allocation3], 1
    %20 = vsyncpa %s19, 0
    loop: start=0, step=1, limit=5
    $region2: #{tpu_custom_call.1} parent=1 // loop_pre_header
      _
    $region3: #{tpu_custom_call.1} parent=1 // loop_header
      %s22 = sphi 0, %s26
      %p23 = scmp.ge.s32.totalorder %s22, 5
      %s32 = sphi 0, %s34
      %s35 = sphi 0, %s32
      %s36 = sphi 0, %s35
      %s52 = sphi 0, %s36
      %s58 = sphi 0, %s60
      %s61 = sphi 0, %s58
      %s62 = sphi 0, %s61
      %s78 = sphi 0, %s62
      %s84 = sphi 0, %s86
      %s87 = sphi 0, %s84
      %s88 = sphi 0, %s87
      %s104 = sphi 0, %s88
      %s108 = sphi 0, %s108
      %s110 = sphi 0, %s108
      %s111 = sphi 0, %s110
      %s125 = sphi 0, %s111
      %s129 = sphi 0, %s129
      %s131 = sphi 0, %s129
      %s132 = sphi 0, %s131
      %s146 = sphi 0, %s132
      %s150 = sphi 0, %s150
      %s152 = sphi 0, %s150
      %s153 = sphi 0, %s152
      %s167 = sphi 0, %s153
      %s171 = sphi 0, %s171
      %s173 = sphi 0, %s171
      %s174 = sphi 0, %s173
      %s188 = sphi 0, %s174
      %s192 = sphi 0, %s192
      %s194 = sphi 0, %s192
      %s195 = sphi 0, %s194
      %s209 = sphi 0, %s195
      %s213 = sphi 0, %s213
      %s215 = sphi 0, %s213
      %s216 = sphi 0, %s215
      %s230 = sphi 0, %s216
      %s234 = sphi 0, %s234
      %s236 = sphi 0, %s234
      %s237 = sphi 0, %s236
      %s251 = sphi 0, %s237
      %s255 = sphi 0, %s255
      %s257 = sphi 0, %s255
      %s258 = sphi 0, %s257
      %s272 = sphi 0, %s258
      %s276 = sphi 0, %s276
      %s278 = sphi 0, %s276
      %s279 = sphi 0, %s278
      %s293 = sphi 0, %s279
      %s297 = sphi 0, %s297
      %s299 = sphi 0, %s297
      %s300 = sphi 0, %s299
      %s314 = sphi 0, %s300
      %s320 = sphi 0, %s322
      %s323 = sphi 0, %s320
      %s324 = sphi 0, %s323
      %s340 = sphi 0, %s324
    $region4: #{tpu_custom_call.1} parent=1 // loop_header_branch
      %25 = sbr.rel (%p23) target = $region8
    $region5: #{tpu_custom_call.1} parent=1 // loop_body
      %s27 = ssub.s32 %s22, 1
      %s28 = ssub.s32 %s22, 2
      %s29 = sadd.s32 %s22, 1
      %s30 = ssub.s32 %s22, %s29
      %p31 = scmp.eq.s32.totalorder %s30, 0
      %s33 = sadd.s32 %s32, 1
      %s34 = scalar_select %p31, %s32, %s33
      %p37 = pneg %p31
      %p38 = scmp.eq.s32.totalorder %s22, 2
      %p39 = por %p37, %p38
      %p40 = scmp.ne.s32.totalorder %s32, %s35
      %p41 = scmp.eq.s32.totalorder %s22, 0
      %p42 = por %p40, %p41
      %p43 = scmp.ne.s32.totalorder %s32, %s35
      %p44 = scmp.eq.s32.totalorder %s27, 2
      %p45 = por %p43, %p44
      %p46 = scmp.ne.s32.totalorder %s35, %s36
      %p47 = scmp.eq.s32.totalorder %s27, 0
      %p48 = por %p46, %p47
      %p49 = scmp.ne.s32.totalorder %s35, %s36
      %p50 = scmp.eq.s32.totalorder %s28, 2
      %p51 = por %p49, %p50
      %p53 = scmp.ne.s32.totalorder %s36, %s52
      %p54 = scmp.eq.s32.totalorder %s28, 0
      %p55 = por %p53, %p54
      %s56 = ssub.s32 %s22, %s29
      %p57 = scmp.eq.s32.totalorder %s56, 0
      %s59 = sadd.s32 %s58, 1
      %s60 = scalar_select %p57, %s58, %s59
      %p63 = pneg %p57
      %p64 = scmp.eq.s32.totalorder %s22, 2
      %p65 = por %p63, %p64
      %p66 = scmp.ne.s32.totalorder %s58, %s61
      %p67 = scmp.eq.s32.totalorder %s22, 0
      %p68 = por %p66, %p67
      %p69 = scmp.ne.s32.totalorder %s58, %s61
      %p70 = scmp.eq.s32.totalorder %s27, 2
      %p71 = por %p69, %p70
      %p72 = scmp.ne.s32.totalorder %s61, %s62
      %p73 = scmp.eq.s32.totalorder %s27, 0
      %p74 = por %p72, %p73
      %p75 = scmp.ne.s32.totalorder %s61, %s62
      %p76 = scmp.eq.s32.totalorder %s28, 2
      %p77 = por %p75, %p76
      %p79 = scmp.ne.s32.totalorder %s62, %s78
      %p80 = scmp.eq.s32.totalorder %s28, 0
      %p81 = por %p79, %p80
      %s82 = ssub.s32 %s22, %s29
      %p83 = scmp.eq.s32.totalorder %s82, 0
      %s85 = sadd.s32 %s84, 1
      %s86 = scalar_select %p83, %s84, %s85
      %p89 = pneg %p83
      %p90 = scmp.eq.s32.totalorder %s22, 2
      %p91 = por %p89, %p90
      %p92 = scmp.ne.s32.totalorder %s84, %s87
      %p93 = scmp.eq.s32.totalorder %s22, 0
      %p94 = por %p92, %p93
      %p95 = scmp.ne.s32.totalorder %s84, %s87
      %p96 = scmp.eq.s32.totalorder %s27, 2
      %p97 = por %p95, %p96
      %p98 = scmp.ne.s32.totalorder %s87, %s88
      %p99 = scmp.eq.s32.totalorder %s27, 0
      %p100 = por %p98, %p99
      %p101 = scmp.ne.s32.totalorder %s87, %s88
      %p102 = scmp.eq.s32.totalorder %s28, 2
      %p103 = por %p101, %p102
      %p105 = scmp.ne.s32.totalorder %s88, %s104
      %p106 = scmp.eq.s32.totalorder %s28, 0
      %p107 = por %p105, %p106
      %s109 = sadd.s32 %s108, 1
      %p112 = scmp.eq.s32.totalorder %s22, 2
      %p113 = scmp.ne.s32.totalorder %s108, %s110
      %p114 = scmp.eq.s32.totalorder %s22, 0
      %p115 = por %p113, %p114
      %p116 = scmp.ne.s32.totalorder %s108, %s110
      %p117 = scmp.eq.s32.totalorder %s27, 2
      %p118 = por %p116, %p117
      %p119 = scmp.ne.s32.totalorder %s110, %s111
      %p120 = scmp.eq.s32.totalorder %s27, 0
      %p121 = por %p119, %p120
      %p122 = scmp.ne.s32.totalorder %s110, %s111
      %p123 = scmp.eq.s32.totalorder %s28, 2
      %p124 = por %p122, %p123
      %p126 = scmp.ne.s32.totalorder %s111, %s125
      %p127 = scmp.eq.s32.totalorder %s28, 0
      %p128 = por %p126, %p127
      %s130 = sadd.s32 %s129, 1
      %p133 = scmp.eq.s32.totalorder %s22, 2
      %p134 = scmp.ne.s32.totalorder %s129, %s131
      %p135 = scmp.eq.s32.totalorder %s22, 0
      %p136 = por %p134, %p135
      %p137 = scmp.ne.s32.totalorder %s129, %s131
      %p138 = scmp.eq.s32.totalorder %s27, 2
      %p139 = por %p137, %p138
      %p140 = scmp.ne.s32.totalorder %s131, %s132
      %p141 = scmp.eq.s32.totalorder %s27, 0
      %p142 = por %p140, %p141
      %p143 = scmp.ne.s32.totalorder %s131, %s132
      %p144 = scmp.eq.s32.totalorder %s28, 2
      %p145 = por %p143, %p144
      %p147 = scmp.ne.s32.totalorder %s132, %s146
      %p148 = scmp.eq.s32.totalorder %s28, 0
      %p149 = por %p147, %p148
      %s151 = sadd.s32 %s150, 1
      %p154 = scmp.eq.s32.totalorder %s22, 2
      %p155 = scmp.ne.s32.totalorder %s150, %s152
      %p156 = scmp.eq.s32.totalorder %s22, 0
      %p157 = por %p155, %p156
      %p158 = scmp.ne.s32.totalorder %s150, %s152
      %p159 = scmp.eq.s32.totalorder %s27, 2
      %p160 = por %p158, %p159
      %p161 = scmp.ne.s32.totalorder %s152, %s153
      %p162 = scmp.eq.s32.totalorder %s27, 0
      %p163 = por %p161, %p162
      %p164 = scmp.ne.s32.totalorder %s152, %s153
      %p165 = scmp.eq.s32.totalorder %s28, 2
      %p166 = por %p164, %p165
      %p168 = scmp.ne.s32.totalorder %s153, %s167
      %p169 = scmp.eq.s32.totalorder %s28, 0
      %p170 = por %p168, %p169
      %s172 = sadd.s32 %s171, 1
      %p175 = scmp.eq.s32.totalorder %s22, 2
      %p176 = scmp.ne.s32.totalorder %s171, %s173
      %p177 = scmp.eq.s32.totalorder %s22, 0
      %p178 = por %p176, %p177
      %p179 = scmp.ne.s32.totalorder %s171, %s173
      %p180 = scmp.eq.s32.totalorder %s27, 2
      %p181 = por %p179, %p180
      %p182 = scmp.ne.s32.totalorder %s173, %s174
      %p183 = scmp.eq.s32.totalorder %s27, 0
      %p184 = por %p182, %p183
      %p185 = scmp.ne.s32.totalorder %s173, %s174
      %p186 = scmp.eq.s32.totalorder %s28, 2
      %p187 = por %p185, %p186
      %p189 = scmp.ne.s32.totalorder %s174, %s188
      %p190 = scmp.eq.s32.totalorder %s28, 0
      %p191 = por %p189, %p190
      %s193 = sadd.s32 %s192, 1
      %p196 = scmp.eq.s32.totalorder %s22, 2
      %p197 = scmp.ne.s32.totalorder %s192, %s194
      %p198 = scmp.eq.s32.totalorder %s22, 0
      %p199 = por %p197, %p198
      %p200 = scmp.ne.s32.totalorder %s192, %s194
      %p201 = scmp.eq.s32.totalorder %s27, 2
      %p202 = por %p200, %p201
      %p203 = scmp.ne.s32.totalorder %s194, %s195
      %p204 = scmp.eq.s32.totalorder %s27, 0
      %p205 = por %p203, %p204
      %p206 = scmp.ne.s32.totalorder %s194, %s195
      %p207 = scmp.eq.s32.totalorder %s28, 2
      %p208 = por %p206, %p207
      %p210 = scmp.ne.s32.totalorder %s195, %s209
      %p211 = scmp.eq.s32.totalorder %s28, 0
      %p212 = por %p210, %p211
      %s214 = sadd.s32 %s213, 1
      %p217 = scmp.eq.s32.totalorder %s22, 2
      %p218 = scmp.ne.s32.totalorder %s213, %s215
      %p219 = scmp.eq.s32.totalorder %s22, 0
      %p220 = por %p218, %p219
      %p221 = scmp.ne.s32.totalorder %s213, %s215
      %p222 = scmp.eq.s32.totalorder %s27, 2
      %p223 = por %p221, %p222
      %p224 = scmp.ne.s32.totalorder %s215, %s216
      %p225 = scmp.eq.s32.totalorder %s27, 0
      %p226 = por %p224, %p225
      %p227 = scmp.ne.s32.totalorder %s215, %s216
      %p228 = scmp.eq.s32.totalorder %s28, 2
      %p229 = por %p227, %p228
      %p231 = scmp.ne.s32.totalorder %s216, %s230
      %p232 = scmp.eq.s32.totalorder %s28, 0
      %p233 = por %p231, %p232
      %s235 = sadd.s32 %s234, 1
      %p238 = scmp.eq.s32.totalorder %s22, 2
      %p239 = scmp.ne.s32.totalorder %s234, %s236
      %p240 = scmp.eq.s32.totalorder %s22, 0
      %p241 = por %p239, %p240
      %p242 = scmp.ne.s32.totalorder %s234, %s236
      %p243 = scmp.eq.s32.totalorder %s27, 2
      %p244 = por %p242, %p243
      %p245 = scmp.ne.s32.totalorder %s236, %s237
      %p246 = scmp.eq.s32.totalorder %s27, 0
      %p247 = por %p245, %p246
      %p248 = scmp.ne.s32.totalorder %s236, %s237
      %p249 = scmp.eq.s32.totalorder %s28, 2
      %p250 = por %p248, %p249
      %p252 = scmp.ne.s32.totalorder %s237, %s251
      %p253 = scmp.eq.s32.totalorder %s28, 0
      %p254 = por %p252, %p253
      %s256 = sadd.s32 %s255, 1
      %p259 = scmp.eq.s32.totalorder %s22, 2
      %p260 = scmp.ne.s32.totalorder %s255, %s257
      %p261 = scmp.eq.s32.totalorder %s22, 0
      %p262 = por %p260, %p261
      %p263 = scmp.ne.s32.totalorder %s255, %s257
      %p264 = scmp.eq.s32.totalorder %s27, 2
      %p265 = por %p263, %p264
      %p266 = scmp.ne.s32.totalorder %s257, %s258
      %p267 = scmp.eq.s32.totalorder %s27, 0
      %p268 = por %p266, %p267
      %p269 = scmp.ne.s32.totalorder %s257, %s258
      %p270 = scmp.eq.s32.totalorder %s28, 2
      %p271 = por %p269, %p270
      %p273 = scmp.ne.s32.totalorder %s258, %s272
      %p274 = scmp.eq.s32.totalorder %s28, 0
      %p275 = por %p273, %p274
      %s277 = sadd.s32 %s276, 1
      %p280 = scmp.eq.s32.totalorder %s22, 2
      %p281 = scmp.ne.s32.totalorder %s276, %s278
      %p282 = scmp.eq.s32.totalorder %s22, 0
      %p283 = por %p281, %p282
      %p284 = scmp.ne.s32.totalorder %s276, %s278
      %p285 = scmp.eq.s32.totalorder %s27, 2
      %p286 = por %p284, %p285
      %p287 = scmp.ne.s32.totalorder %s278, %s279
      %p288 = scmp.eq.s32.totalorder %s27, 0
      %p289 = por %p287, %p288
      %p290 = scmp.ne.s32.totalorder %s278, %s279
      %p291 = scmp.eq.s32.totalorder %s28, 2
      %p292 = por %p290, %p291
      %p294 = scmp.ne.s32.totalorder %s279, %s293
      %p295 = scmp.eq.s32.totalorder %s28, 0
      %p296 = por %p294, %p295
      %s298 = sadd.s32 %s297, 1
      %p301 = scmp.eq.s32.totalorder %s22, 2
      %p302 = scmp.ne.s32.totalorder %s297, %s299
      %p303 = scmp.eq.s32.totalorder %s22, 0
      %p304 = por %p302, %p303
      %p305 = scmp.ne.s32.totalorder %s297, %s299
      %p306 = scmp.eq.s32.totalorder %s27, 2
      %p307 = por %p305, %p306
      %p308 = scmp.ne.s32.totalorder %s299, %s300
      %p309 = scmp.eq.s32.totalorder %s27, 0
      %p310 = por %p308, %p309
      %p311 = scmp.ne.s32.totalorder %s299, %s300
      %p312 = scmp.eq.s32.totalorder %s28, 2
      %p313 = por %p311, %p312
      %p315 = scmp.ne.s32.totalorder %s300, %s314
      %p316 = scmp.eq.s32.totalorder %s28, 0
      %p317 = por %p315, %p316
      %s318 = ssub.s32 %s22, %s29
      %p319 = scmp.eq.s32.totalorder %s318, 0
      %s321 = sadd.s32 %s320, 1
      %s322 = scalar_select %p319, %s320, %s321
      %p325 = pneg %p319
      %p326 = scmp.eq.s32.totalorder %s22, 2
      %p327 = por %p325, %p326
      %p328 = scmp.ne.s32.totalorder %s320, %s323
      %p329 = scmp.eq.s32.totalorder %s22, 0
      %p330 = por %p328, %p329
      %p331 = scmp.ne.s32.totalorder %s320, %s323
      %p332 = scmp.eq.s32.totalorder %s27, 2
      %p333 = por %p331, %p332
      %p334 = scmp.ne.s32.totalorder %s323, %s324
      %p335 = scmp.eq.s32.totalorder %s27, 0
      %p336 = por %p334, %p335
      %p337 = scmp.ne.s32.totalorder %s323, %s324
      %p338 = scmp.eq.s32.totalorder %s28, 2
      %p339 = por %p337, %p338
      %p341 = scmp.ne.s32.totalorder %s324, %s340
      %p342 = scmp.eq.s32.totalorder %s28, 0
      %p343 = por %p341, %p342
      %p344 = scmp.le.s32.totalorder 1, %s22
      %p345 = scmp.lt.s32.totalorder %s22, 4
      %p346 = pnand %p344, %p345
      %p347 = pneg %p346
      // Predicated region
      $region9: #{tpu_custom_call.1} parent=5 // pred_check
        _
      $region10: #{tpu_custom_call.1} parent=5 // pred_check_branch
        %349 = sbr.rel (%p346) target = $region12
      $region11: #{tpu_custom_call.1} parent=5 // pred_region
        %s350 = ssub.s32 %s22, 1
        // Predicated region
        $region13: #{tpu_custom_call.1} parent=11 // pred_check
          %p351 = pneg %p121
        $region14: #{tpu_custom_call.1} parent=11 // pred_check_branch
          %353 = sbr.rel (%p351) target = $region16
        $region15: #{tpu_custom_call.1} parent=11 // pred_region
          _
        $region16: #{tpu_custom_call.1} parent=11 // pred_fallthru
          _
        // Predicated region
        $region17: #{tpu_custom_call.1} parent=11 // pred_check
          %p354 = pneg %p142
        $region18: #{tpu_custom_call.1} parent=11 // pred_check_branch
          %356 = sbr.rel (%p354) target = $region20
        $region19: #{tpu_custom_call.1} parent=11 // pred_region
          _
        $region20: #{tpu_custom_call.1} parent=11 // pred_fallthru
          _
        // Predicated region
        $region21: #{tpu_custom_call.1} parent=11 // pred_check
          %p357 = pneg %p163
        $region22: #{tpu_custom_call.1} parent=11 // pred_check_branch
          %359 = sbr.rel (%p357) target = $region24
        $region23: #{tpu_custom_call.1} parent=11 // pred_region
          _
        $region24: #{tpu_custom_call.1} parent=11 // pred_fallthru
          _
        // Predicated region
        $region25: #{tpu_custom_call.1} parent=11 // pred_check
          %p360 = pneg %p184
        $region26: #{tpu_custom_call.1} parent=11 // pred_check_branch
          %362 = sbr.rel (%p360) target = $region28
        $region27: #{tpu_custom_call.1} parent=11 // pred_region
          _
        $region28: #{tpu_custom_call.1} parent=11 // pred_fallthru
          _
        // Predicated region
        $region29: #{tpu_custom_call.1} parent=11 // pred_check
          %p363 = pneg %p205
        $region30: #{tpu_custom_call.1} parent=11 // pred_check_branch
          %365 = sbr.rel (%p363) target = $region32
        $region31: #{tpu_custom_call.1} parent=11 // pred_region
          _
        $region32: #{tpu_custom_call.1} parent=11 // pred_fallthru
          _
        // Predicated region
        $region33: #{tpu_custom_call.1} parent=11 // pred_check
          %p366 = pneg %p226
        $region34: #{tpu_custom_call.1} parent=11 // pred_check_branch
          %368 = sbr.rel (%p366) target = $region36
        $region35: #{tpu_custom_call.1} parent=11 // pred_region
          _
        $region36: #{tpu_custom_call.1} parent=11 // pred_fallthru
          _
        // Predicated region
        $region37: #{tpu_custom_call.1} parent=11 // pred_check
          %p369 = pneg %p247
        $region38: #{tpu_custom_call.1} parent=11 // pred_check_branch
          %371 = sbr.rel (%p369) target = $region40
        $region39: #{tpu_custom_call.1} parent=11 // pred_region
          _
        $region40: #{tpu_custom_call.1} parent=11 // pred_fallthru
          _
        // Predicated region
        $region41: #{tpu_custom_call.1} parent=11 // pred_check
          %p372 = pneg %p268
        $region42: #{tpu_custom_call.1} parent=11 // pred_check_branch
          %374 = sbr.rel (%p372) target = $region44
        $region43: #{tpu_custom_call.1} parent=11 // pred_region
          _
        $region44: #{tpu_custom_call.1} parent=11 // pred_fallthru
          _
        // Predicated region
        $region45: #{tpu_custom_call.1} parent=11 // pred_check
          %p375 = pneg %p289
        $region46: #{tpu_custom_call.1} parent=11 // pred_check_branch
          %377 = sbr.rel (%p375) target = $region48
        $region47: #{tpu_custom_call.1} parent=11 // pred_region
          _
        $region48: #{tpu_custom_call.1} parent=11 // pred_fallthru
          _
        // Predicated region
        $region49: #{tpu_custom_call.1} parent=11 // pred_check
          %p378 = pneg %p310
        $region50: #{tpu_custom_call.1} parent=11 // pred_check_branch
          %380 = sbr.rel (%p378) target = $region52
        $region51: #{tpu_custom_call.1} parent=11 // pred_region
          _
        $region52: #{tpu_custom_call.1} parent=11 // pred_fallthru
          _
      $region12: #{tpu_custom_call.1} parent=5 // pred_fallthru
        _
      %p381 = scmp.lt.s32.totalorder %s22, 3
      // Predicated region
      $region53: #{tpu_custom_call.1} parent=5 // pred_check
        %p382 = pneg %p381
      $region54: #{tpu_custom_call.1} parent=5 // pred_check_branch
        %384 = sbr.rel (%p382) target = $region56
      $region55: #{tpu_custom_call.1} parent=5 // pred_region
        // Predicated region
        $region57: #{tpu_custom_call.1} parent=55 // pred_check
          %p385 = pneg %p42
        $region58: #{tpu_custom_call.1} parent=55 // pred_check_branch
          %387 = sbr.rel (%p385) target = $region60
        $region59: #{tpu_custom_call.1} parent=55 // pred_region
          %p388 = scmp.lt.s32.totalorder %s22, 2
          %s389 = scalar_select %p388, %s22, 2
          %s390 = smul.addr %s389, 8
          %s391 = scalar_lea.vmem %s0, %s390
        $region60: #{tpu_custom_call.1} parent=55 // pred_fallthru
          _
        // Predicated region
        $region61: #{tpu_custom_call.1} parent=55 // pred_check
          %p392 = pneg %p68
        $region62: #{tpu_custom_call.1} parent=55 // pred_check_branch
          %394 = sbr.rel (%p392) target = $region64
        $region63: #{tpu_custom_call.1} parent=55 // pred_region
          %p395 = scmp.lt.s32.totalorder %s22, 2
          %s396 = scalar_select %p395, %s22, 2
          %s397 = smul.addr %s396, 8
          %s398 = scalar_lea.vmem %s1, %s397
        $region64: #{tpu_custom_call.1} parent=55 // pred_fallthru
          _
        // Predicated region
        $region65: #{tpu_custom_call.1} parent=55 // pred_check
          %p399 = pneg %p94
        $region66: #{tpu_custom_call.1} parent=55 // pred_check_branch
          %401 = sbr.rel (%p399) target = $region68
        $region67: #{tpu_custom_call.1} parent=55 // pred_region
          %p402 = scmp.lt.s32.totalorder %s22, 2
          %s403 = scalar_select %p402, %s22, 2
          %s404 = smul.addr %s403, 8
          %s405 = scalar_lea.vmem %s2, %s404
        $region68: #{tpu_custom_call.1} parent=55 // pred_fallthru
          _
      $region56: #{tpu_custom_call.1} parent=5 // pred_fallthru
        _
      %p406 = scmp.le.s32.totalorder 1, %s22
      %p407 = scmp.lt.s32.totalorder %s22, 4
      %p408 = pnand %p406, %p407
      %p409 = pneg %p408
      // Predicated region
      $region69: #{tpu_custom_call.1} parent=5 // pred_check
        _
      $region70: #{tpu_custom_call.1} parent=5 // pred_check_branch
        %411 = sbr.rel (%p408) target = $region72
      $region71: #{tpu_custom_call.1} parent=5 // pred_region
        %s412 = ssub.s32 %s22, 1
        %p413 = scmp.lt.s32.totalorder %s27, 2
        %s414 = scalar_select %p413, %s27, 2
        %s415 = smul.addr %s414, 8
        %s416 = scalar_lea.vmem %s0, %s415
        %p417 = pneg %p48
        %p418 = pneg %p45
        %p419 = scmp.lt.s32.totalorder %s27, 2
        %s420 = scalar_select %p419, %s27, 2
        %s421 = smul.addr %s420, 8
        %s422 = scalar_lea.vmem %s1, %s421
        %p423 = pneg %p74
        %p424 = pneg %p71
        %p425 = scmp.lt.s32.totalorder %s27, 2
        %s426 = scalar_select %p425, %s27, 2
        %s427 = smul.addr %s426, 8
        %s428 = scalar_lea.vmem %s2, %s427
        %p429 = pneg %p100
        %p430 = pneg %p97
        %p431 = pneg %p121
        %p432 = pneg %p118
        %p433 = pneg %p142
        %p434 = pneg %p139
        %p435 = pneg %p163
        %p436 = pneg %p160
        %p437 = pneg %p184
        %p438 = pneg %p181
        %p439 = pneg %p205
        %p440 = pneg %p202
        %p441 = pneg %p226
        %p442 = pneg %p223
        %p443 = pneg %p247
        %p444 = pneg %p244
        %p445 = pneg %p268
        %p446 = pneg %p265
        %p447 = pneg %p289
        %p448 = pneg %p286
        %p449 = pneg %p310
        %p450 = pneg %p307
        %p451 = pneg %p336
        %p452 = pneg %p333
        %s453 = sand.u32 %s323, 1
        %s454 = scalar_lea.sflag [#allocation3], %s453
        %s455 = sand.u32 %s323, 1
        %s456 = smul.addr %s455, 8
        %s457 = scalar_lea.vmem [#allocation2], %s456
        %p458 = scmp.lt.s32.totalorder %s27, 2
        %s459 = scalar_select %p458, %s27, 2
        %s460 = smul.addr %s459, 8
        %s461 = scalar_lea.vmem %s0, %s460
        %p462 = scmp.lt.s32.totalorder %s27, 2
        %s463 = scalar_select %p462, %s27, 2
        %s464 = smul.addr %s463, 8
        %s465 = scalar_lea.vmem %s1, %s464
        %p466 = scmp.lt.s32.totalorder %s27, 2
        %s467 = scalar_select %p466, %s27, 2
        %s468 = smul.addr %s467, 8
        %s469 = scalar_lea.vmem %s2, %s468
        %v470 = vld [vmem:[%s461] sm:$0xff]
        %v471 = vld [vmem:[%s3] sm:$0xff]
        %v472 = vld [vmem:[%s3 + $0x8] sm:$0xff]
        %vm473 = vcmask 130048
        %v475 = vsel %vm473, %v470, 0
        %477 = vmatprep.subr.mxu0 0.0
        %478 = vmatpush1.msra.mxu0 %v471
        %479 = vmatprep.subr.mxu0 0.0
        %480 = vmatpush1.msra.mxu0 %v472
        %481 = vmatprep.subr.mxu0 0.0
        %482 = vmatpush1.msra.mxu0 0.0
        %483 = vmatprep.subr.mxu0 0.0
        %484 = vmatpush1.msra.mxu0 0.0
        %485 = vmatprep.subr.mxu0 0.0
        %486 = vmatpush1.msra.mxu0 0.0
        %487 = vmatprep.subr.mxu0 0.0
        %488 = vmatpush1.msra.mxu0 0.0
        %489 = vmatprep.subr.mxu0 0.0
        %490 = vmatpush1.msra.mxu0 0.0
        %491 = vmatprep.subr.mxu0 0.0
        %492 = vmatpush1.msra.mxu0 0.0
        %493 = vmatprep.subr.mxu0 0.0
        %494 = vmatpush1.msra.mxu0 0.0
        %495 = vmatprep.subr.mxu0 0.0
        %496 = vmatpush1.msra.mxu0 0.0
        %497 = vmatprep.subr.mxu0 0.0
        %498 = vmatpush1.msra.mxu0 0.0
        %499 = vmatprep.subr.mxu0 0.0
        %500 = vmatpush1.msra.mxu0 0.0
        %501 = vmatprep.subr.mxu0 0.0
        %502 = vmatpush1.msra.mxu0 0.0
        %503 = vmatprep.subr.mxu0 0.0
        %504 = vmatpush1.msra.mxu0 0.0
        %505 = vmatprep.subr.mxu0 0.0
        %506 = vmatpush1.msra.mxu0 0.0
        %507 = vmatprep.subr.mxu0 0.0
        %508 = vmatpush1.msra.mxu0 0.0
        %509 = vmatprep.subr.mxu0 0.0
        %510 = vmatpush1.msra.mxu0 0.0
        %511 = vmatprep.subr.mxu0 0.0
        %512 = vmatpush1.msra.mxu0 0.0
        %513 = vmatprep.subr.mxu0 0.0
        %514 = vmatpush1.msra.mxu0 0.0
        %515 = vmatprep.subr.mxu0 0.0
        %516 = vmatpush1.msra.mxu0 0.0
        %517 = vmatprep.subr.mxu0 0.0
        %518 = vmatpush1.msra.mxu0 0.0
        %519 = vmatprep.subr.mxu0 0.0
        %520 = vmatpush1.msra.mxu0 0.0
        %521 = vmatprep.subr.mxu0 0.0
        %522 = vmatpush1.msra.mxu0 0.0
        %523 = vmatprep.subr.mxu0 0.0
        %524 = vmatpush1.msra.mxu0 0.0
        %525 = vmatprep.subr.mxu0 0.0
        %526 = vmatpush1.msra.mxu0 0.0
        %527 = vmatprep.subr.mxu0 0.0
        %528 = vmatpush1.msra.mxu0 0.0
        %529 = vmatprep.subr.mxu0 0.0
        %530 = vmatpush1.msra.mxu0 0.0
        %531 = vmatprep.subr.mxu0 0.0
        %532 = vmatpush1.msra.mxu0 0.0
        %533 = vmatprep.subr.mxu0 0.0
        %534 = vmatpush1.msra.mxu0 0.0
        %535 = vmatprep.subr.mxu0 0.0
        %536 = vmatpush1.msra.mxu0 0.0
        %537 = vmatprep.subr.mxu0 0.0
        %538 = vmatpush1.msra.mxu0 0.0
        %539 = vmatprep.subr.mxu0 0.0
        %540 = vmatpush1.msra.mxu0 0.0
        %541 = vmatprep.mubr.f32.mxu0 0.0
        %542 = vmatmul.mubr.f32.gmra.mrb[0].mxu0 %v475
        %v543 = vpop.f32.mrb[0].mxu0
        %v544 = vadd.f32 0.0, %v543
        %v545 = vpop.f32.mrb[0].mxu0
        %546 = vdwg.mxu0
        %v547 = vld [vmem:[%s4] sm:$0x1]
        %v549 = vlaneseq
        %v550 = vshrl.u32 %v549, 7
        %v551 = vsub.s32 0, %v550
        %v552 = vrot.slane %v547, %v551
        %v554 = vadd.f32 %v544, %v552
        %v555 = vmax.f32 %v554, 0.0
        %v556 = vld [vmem:[%s5] sm:$0xff]
        %v557 = vld [vmem:[%s5 + $0x8] sm:$0xff]
        %v558 = vld [vmem:[%s5 + $0x10] sm:$0xff]
        %v559 = vld [vmem:[%s5 + $0x18] sm:$0xff]
        %v560 = vld [vmem:[%s6] sm:$0x1]
        %v562 = vlaneseq
        %v563 = vshrl.u32 %v562, 7
        %v564 = vsub.s32 0, %v563
        %v565 = vrot.slane %v560, %v564
        %vm567 = vcmask 261120
        %v569 = vsel %vm567, %v555, 0
        %571 = vmatprep.subr.mxu0 0.0
        %572 = vmatpush1.msra.mxu0 %v556
        %573 = vmatprep.subr.mxu0 0.0
        %574 = vmatpush1.msra.mxu0 %v557
        %575 = vmatprep.subr.mxu0 0.0
        %576 = vmatpush1.msra.mxu0 %v558
        %577 = vmatprep.subr.mxu0 0.0
        %578 = vmatpush1.msra.mxu0 %v559
        %579 = vmatprep.subr.mxu0 0.0
        %580 = vmatpush1.msra.mxu0 0.0
        %581 = vmatprep.subr.mxu0 0.0
        %582 = vmatpush1.msra.mxu0 0.0
        %583 = vmatprep.subr.mxu0 0.0
        %584 = vmatpush1.msra.mxu0 0.0
        %585 = vmatprep.subr.mxu0 0.0
        %586 = vmatpush1.msra.mxu0 0.0
        %587 = vmatprep.subr.mxu0 0.0
        %588 = vmatpush1.msra.mxu0 0.0
        %589 = vmatprep.subr.mxu0 0.0
        %590 = vmatpush1.msra.mxu0 0.0
        %591 = vmatprep.subr.mxu0 0.0
        %592 = vmatpush1.msra.mxu0 0.0
        %593 = vmatprep.subr.mxu0 0.0
        %594 = vmatpush1.msra.mxu0 0.0
        %595 = vmatprep.subr.mxu0 0.0
        %596 = vmatpush1.msra.mxu0 0.0
        %597 = vmatprep.subr.mxu0 0.0
        %598 = vmatpush1.msra.mxu0 0.0
        %599 = vmatprep.subr.mxu0 0.0
        %600 = vmatpush1.msra.mxu0 0.0
        %601 = vmatprep.subr.mxu0 0.0
        %602 = vmatpush1.msra.mxu0 0.0
        %603 = vmatprep.subr.mxu0 0.0
        %604 = vmatpush1.msra.mxu0 0.0
        %605 = vmatprep.subr.mxu0 0.0
        %606 = vmatpush1.msra.mxu0 0.0
        %607 = vmatprep.subr.mxu0 0.0
        %608 = vmatpush1.msra.mxu0 0.0
        %609 = vmatprep.subr.mxu0 0.0
        %610 = vmatpush1.msra.mxu0 0.0
        %611 = vmatprep.subr.mxu0 0.0
        %612 = vmatpush1.msra.mxu0 0.0
        %613 = vmatprep.subr.mxu0 0.0
        %614 = vmatpush1.msra.mxu0 0.0
        %615 = vmatprep.subr.mxu0 0.0
        %616 = vmatpush1.msra.mxu0 0.0
        %617 = vmatprep.subr.mxu0 0.0
        %618 = vmatpush1.msra.mxu0 0.0
        %619 = vmatprep.subr.mxu0 0.0
        %620 = vmatpush1.msra.mxu0 0.0
        %621 = vmatprep.subr.mxu0 0.0
        %622 = vmatpush1.msra.mxu0 0.0
        %623 = vmatprep.subr.mxu0 0.0
        %624 = vmatpush1.msra.mxu0 0.0
        %625 = vmatprep.subr.mxu0 0.0
        %626 = vmatpush1.msra.mxu0 0.0
        %627 = vmatprep.subr.mxu0 0.0
        %628 = vmatpush1.msra.mxu0 0.0
        %629 = vmatprep.subr.mxu0 0.0
        %630 = vmatpush1.msra.mxu0 0.0
        %631 = vmatprep.subr.mxu0 0.0
        %632 = vmatpush1.msra.mxu0 0.0
        %633 = vmatprep.subr.mxu0 0.0
        %634 = vmatpush1.msra.mxu0 0.0
        %635 = vmatprep.mubr.f32.mxu0 0.0
        %636 = vmatmul.mubr.f32.gmra.mrb[0].mxu0 %v569
        %v637 = vpop.f32.mrb[0].mxu0
        %v638 = vadd.f32 %v565, %v637
        %v639 = vpop.f32.mrb[0].mxu0
        %640 = vdwg.mxu0
        %v641 = vmul.f32 %v638, 0.5
        %v642 = vmul.f32 %v641, 1.442695
        %v643 = vpow.pop %v642
        %v644 = vld [vmem:[%s465] sm:$0xff]
        %646 = vrot.lane.b32.xlu0 %v644, 8
        %v647 = vpop.permute.xlu0 %646
        %v649 = vmul.f32 %v643, %v647
        %651 = vrot.lane.b32.xlu0 %v649, 120
        %v652 = vpop.permute.xlu0 %651
        %v654 = vadd.f32 %v638, %v652
        %v655 = vld [vmem:[%s7] sm:$0xff]
        %657 = vrot.lane.b32.xlu0 %v544, 96
        %v658 = vpop.permute.xlu0 %657
        %vm660 = vcmask 64512
        %v662 = vsel %vm660, %v654, 0
        %664 = vmatprep.subr.mxu0 0.0
        %665 = vmatpush1.msra.mxu0 %v655
        %666 = vmatprep.subr.mxu0 0.0
        %667 = vmatpush1.msra.mxu0 0.0
        %668 = vmatprep.subr.mxu0 0.0
        %669 = vmatpush1.msra.mxu0 0.0
        %670 = vmatprep.subr.mxu0 0.0
        %671 = vmatpush1.msra.mxu0 0.0
        %672 = vmatprep.subr.mxu0 0.0
        %673 = vmatpush1.msra.mxu0 0.0
        %674 = vmatprep.subr.mxu0 0.0
        %675 = vmatpush1.msra.mxu0 0.0
        %676 = vmatprep.subr.mxu0 0.0
        %677 = vmatpush1.msra.mxu0 0.0
        %678 = vmatprep.subr.mxu0 0.0
        %679 = vmatpush1.msra.mxu0 0.0
        %680 = vmatprep.subr.mxu0 0.0
        %681 = vmatpush1.msra.mxu0 0.0
        %682 = vmatprep.subr.mxu0 0.0
        %683 = vmatpush1.msra.mxu0 0.0
        %684 = vmatprep.subr.mxu0 0.0
        %685 = vmatpush1.msra.mxu0 0.0
        %686 = vmatprep.subr.mxu0 0.0
        %687 = vmatpush1.msra.mxu0 0.0
        %688 = vmatprep.subr.mxu0 0.0
        %689 = vmatpush1.msra.mxu0 0.0
        %690 = vmatprep.subr.mxu0 0.0
        %691 = vmatpush1.msra.mxu0 0.0
        %692 = vmatprep.subr.mxu0 0.0
        %693 = vmatpush1.msra.mxu0 0.0
        %694 = vmatprep.subr.mxu0 0.0
        %695 = vmatpush1.msra.mxu0 0.0
        %696 = vmatprep.subr.mxu0 0.0
        %697 = vmatpush1.msra.mxu0 0.0
        %698 = vmatprep.subr.mxu0 0.0
        %699 = vmatpush1.msra.mxu0 0.0
        %700 = vmatprep.subr.mxu0 0.0
        %701 = vmatpush1.msra.mxu0 0.0
        %702 = vmatprep.subr.mxu0 0.0
        %703 = vmatpush1.msra.mxu0 0.0
        %704 = vmatprep.subr.mxu0 0.0
        %705 = vmatpush1.msra.mxu0 0.0
        %706 = vmatprep.subr.mxu0 0.0
        %707 = vmatpush1.msra.mxu0 0.0
        %708 = vmatprep.subr.mxu0 0.0
        %709 = vmatpush1.msra.mxu0 0.0
        %710 = vmatprep.subr.mxu0 0.0
        %711 = vmatpush1.msra.mxu0 0.0
        %712 = vmatprep.subr.mxu0 0.0
        %713 = vmatpush1.msra.mxu0 0.0
        %714 = vmatprep.subr.mxu0 0.0
        %715 = vmatpush1.msra.mxu0 0.0
        %716 = vmatprep.subr.mxu0 0.0
        %717 = vmatpush1.msra.mxu0 0.0
        %718 = vmatprep.subr.mxu0 0.0
        %719 = vmatpush1.msra.mxu0 0.0
        %720 = vmatprep.subr.mxu0 0.0
        %721 = vmatpush1.msra.mxu0 0.0
        %722 = vmatprep.subr.mxu0 0.0
        %723 = vmatpush1.msra.mxu0 0.0
        %724 = vmatprep.subr.mxu0 0.0
        %725 = vmatpush1.msra.mxu0 0.0
        %726 = vmatprep.subr.mxu0 0.0
        %727 = vmatpush1.msra.mxu0 0.0
        %728 = vmatprep.mubr.f32.mxu0 0.0
        %729 = vmatmul.mubr.f32.gmra.mrb[0].mxu0 %v662
        %v730 = vpop.f32.mrb[0].mxu0
        %v731 = vadd.f32 %v658, %v730
        %v732 = vpop.f32.mrb[0].mxu0
        %733 = vdwg.mxu0
        %v734 = vld [vmem:[%s8] sm:$0x1]
        %v736 = vlaneseq
        %v737 = vshrl.u32 %v736, 7
        %v738 = vsub.s32 0, %v737
        %v739 = vrot.slane %v734, %v738
        %v741 = vadd.f32 %v731, %v739
        %v742 = vmax.f32 %v741, 0.0
        %v743 = vld [vmem:[%s9] sm:$0xff]
        %v744 = vld [vmem:[%s9 + $0x8] sm:$0xff]
        %v745 = vld [vmem:[%s9 + $0x10] sm:$0xff]
        %v746 = vld [vmem:[%s9 + $0x18] sm:$0xff]
        %v747 = vld [vmem:[%s10] sm:$0x1]
        %v749 = vlaneseq
        %v750 = vshrl.u32 %v749, 7
        %v751 = vsub.s32 0, %v750
        %v752 = vrot.slane %v747, %v751
        %v755 = vsel %vm567, %v742, 0
        %757 = vmatprep.subr.mxu0 0.0
        %758 = vmatpush1.msra.mxu0 %v743
        %759 = vmatprep.subr.mxu0 0.0
        %760 = vmatpush1.msra.mxu0 %v744
        %761 = vmatprep.subr.mxu0 0.0
        %762 = vmatpush1.msra.mxu0 %v745
        %763 = vmatprep.subr.mxu0 0.0
        %764 = vmatpush1.msra.mxu0 %v746
        %765 = vmatprep.subr.mxu0 0.0
        %766 = vmatpush1.msra.mxu0 0.0
        %767 = vmatprep.subr.mxu0 0.0
        %768 = vmatpush1.msra.mxu0 0.0
        %769 = vmatprep.subr.mxu0 0.0
        %770 = vmatpush1.msra.mxu0 0.0
        %771 = vmatprep.subr.mxu0 0.0
        %772 = vmatpush1.msra.mxu0 0.0
        %773 = vmatprep.subr.mxu0 0.0
        %774 = vmatpush1.msra.mxu0 0.0
        %775 = vmatprep.subr.mxu0 0.0
        %776 = vmatpush1.msra.mxu0 0.0
        %777 = vmatprep.subr.mxu0 0.0
        %778 = vmatpush1.msra.mxu0 0.0
        %779 = vmatprep.subr.mxu0 0.0
        %780 = vmatpush1.msra.mxu0 0.0
        %781 = vmatprep.subr.mxu0 0.0
        %782 = vmatpush1.msra.mxu0 0.0
        %783 = vmatprep.subr.mxu0 0.0
        %784 = vmatpush1.msra.mxu0 0.0
        %785 = vmatprep.subr.mxu0 0.0
        %786 = vmatpush1.msra.mxu0 0.0
        %787 = vmatprep.subr.mxu0 0.0
        %788 = vmatpush1.msra.mxu0 0.0
        %789 = vmatprep.subr.mxu0 0.0
        %790 = vmatpush1.msra.mxu0 0.0
        %791 = vmatprep.subr.mxu0 0.0
        %792 = vmatpush1.msra.mxu0 0.0
        %793 = vmatprep.subr.mxu0 0.0
        %794 = vmatpush1.msra.mxu0 0.0
        %795 = vmatprep.subr.mxu0 0.0
        %796 = vmatpush1.msra.mxu0 0.0
        %797 = vmatprep.subr.mxu0 0.0
        %798 = vmatpush1.msra.mxu0 0.0
        %799 = vmatprep.subr.mxu0 0.0
        %800 = vmatpush1.msra.mxu0 0.0
        %801 = vmatprep.subr.mxu0 0.0
        %802 = vmatpush1.msra.mxu0 0.0
        %803 = vmatprep.subr.mxu0 0.0
        %804 = vmatpush1.msra.mxu0 0.0
        %805 = vmatprep.subr.mxu0 0.0
        %806 = vmatpush1.msra.mxu0 0.0
        %807 = vmatprep.subr.mxu0 0.0
        %808 = vmatpush1.msra.mxu0 0.0
        %809 = vmatprep.subr.mxu0 0.0
        %810 = vmatpush1.msra.mxu0 0.0
        %811 = vmatprep.subr.mxu0 0.0
        %812 = vmatpush1.msra.mxu0 0.0
        %813 = vmatprep.subr.mxu0 0.0
        %814 = vmatpush1.msra.mxu0 0.0
        %815 = vmatprep.subr.mxu0 0.0
        %816 = vmatpush1.msra.mxu0 0.0
        %817 = vmatprep.subr.mxu0 0.0
        %818 = vmatpush1.msra.mxu0 0.0
        %819 = vmatprep.subr.mxu0 0.0
        %820 = vmatpush1.msra.mxu0 0.0
        %821 = vmatprep.mubr.f32.mxu0 0.0
        %822 = vmatmul.mubr.f32.gmra.mrb[0].mxu0 %v755
        %v823 = vpop.f32.mrb[0].mxu0
        %v824 = vadd.f32 %v752, %v823
        %v825 = vpop.f32.mrb[0].mxu0
        %826 = vdwg.mxu0
        %v827 = vmax.f32 %v824, 0.0
        %v828 = vld [vmem:[%s11] sm:$0xff]
        %v829 = vld [vmem:[%s11 + $0x8] sm:$0xff]
        %v830 = vld [vmem:[%s11 + $0x10] sm:$0xff]
        %v831 = vld [vmem:[%s11 + $0x18] sm:$0xff]
        %v832 = vld [vmem:[%s12] sm:$0x1]
        %v834 = vlaneseq
        %v835 = vshrl.u32 %v834, 7
        %v836 = vsub.s32 0, %v835
        %v837 = vrot.slane %v832, %v836
        %v840 = vsel %vm567, %v827, 0
        %842 = vmatprep.subr.mxu0 0.0
        %843 = vmatpush1.msra.mxu0 %v828
        %844 = vmatprep.subr.mxu0 0.0
        %845 = vmatpush1.msra.mxu0 %v829
        %846 = vmatprep.subr.mxu0 0.0
        %847 = vmatpush1.msra.mxu0 %v830
        %848 = vmatprep.subr.mxu0 0.0
        %849 = vmatpush1.msra.mxu0 %v831
        %850 = vmatprep.subr.mxu0 0.0
        %851 = vmatpush1.msra.mxu0 0.0
        %852 = vmatprep.subr.mxu0 0.0
        %853 = vmatpush1.msra.mxu0 0.0
        %854 = vmatprep.subr.mxu0 0.0
        %855 = vmatpush1.msra.mxu0 0.0
        %856 = vmatprep.subr.mxu0 0.0
        %857 = vmatpush1.msra.mxu0 0.0
        %858 = vmatprep.subr.mxu0 0.0
        %859 = vmatpush1.msra.mxu0 0.0
        %860 = vmatprep.subr.mxu0 0.0
        %861 = vmatpush1.msra.mxu0 0.0
        %862 = vmatprep.subr.mxu0 0.0
        %863 = vmatpush1.msra.mxu0 0.0
        %864 = vmatprep.subr.mxu0 0.0
        %865 = vmatpush1.msra.mxu0 0.0
        %866 = vmatprep.subr.mxu0 0.0
        %867 = vmatpush1.msra.mxu0 0.0
        %868 = vmatprep.subr.mxu0 0.0
        %869 = vmatpush1.msra.mxu0 0.0
        %870 = vmatprep.subr.mxu0 0.0
        %871 = vmatpush1.msra.mxu0 0.0
        %872 = vmatprep.subr.mxu0 0.0
        %873 = vmatpush1.msra.mxu0 0.0
        %874 = vmatprep.subr.mxu0 0.0
        %875 = vmatpush1.msra.mxu0 0.0
        %876 = vmatprep.subr.mxu0 0.0
        %877 = vmatpush1.msra.mxu0 0.0
        %878 = vmatprep.subr.mxu0 0.0
        %879 = vmatpush1.msra.mxu0 0.0
        %880 = vmatprep.subr.mxu0 0.0
        %881 = vmatpush1.msra.mxu0 0.0
        %882 = vmatprep.subr.mxu0 0.0
        %883 = vmatpush1.msra.mxu0 0.0
        %884 = vmatprep.subr.mxu0 0.0
        %885 = vmatpush1.msra.mxu0 0.0
        %886 = vmatprep.subr.mxu0 0.0
        %887 = vmatpush1.msra.mxu0 0.0
        %888 = vmatprep.subr.mxu0 0.0
        %889 = vmatpush1.msra.mxu0 0.0
        %890 = vmatprep.subr.mxu0 0.0
        %891 = vmatpush1.msra.mxu0 0.0
        %892 = vmatprep.subr.mxu0 0.0
        %893 = vmatpush1.msra.mxu0 0.0
        %894 = vmatprep.subr.mxu0 0.0
        %895 = vmatpush1.msra.mxu0 0.0
        %896 = vmatprep.subr.mxu0 0.0
        %897 = vmatpush1.msra.mxu0 0.0
        %898 = vmatprep.subr.mxu0 0.0
        %899 = vmatpush1.msra.mxu0 0.0
        %900 = vmatprep.subr.mxu0 0.0
        %901 = vmatpush1.msra.mxu0 0.0
        %902 = vmatprep.subr.mxu0 0.0
        %903 = vmatpush1.msra.mxu0 0.0
        %904 = vmatprep.subr.mxu0 0.0
        %905 = vmatpush1.msra.mxu0 0.0
        %906 = vmatprep.mubr.f32.mxu0 0.0
        %907 = vmatmul.mubr.f32.gmra.mrb[0].mxu0 %v840
        %v908 = vpop.f32.mrb[0].mxu0
        %v909 = vadd.f32 %v837, %v908
        %v910 = vpop.f32.mrb[0].mxu0
        %911 = vdwg.mxu0
        %v912 = vld [vmem:[%s469] sm:$0xff]
        %v913 = vlog2.pop %v912
        %v914 = vmul.f32 %v913, 0.6931472
        %v915 = vsub.f32 0.0, %v914
        %v916 = vlog2.pop %v915
        %v917 = vmul.f32 %v916, 0.6931472
        %v918 = vsub.f32 0.0, %v917
        %v919 = vadd.f32 %v909, %v918
        %vm920 = vcmask 39936
        %v921 = vsel %vm920, %v919, -inf
        %922 = vmax.xlane.f32.xlu0 %v921
        %v923 = vpop.xlane.xlu0 %922
        %v924 = vsub.f32 %v919, %v923
        %v925 = vmul.f32 %v924, 1.442695
        %v926 = vpow.pop %v925
        %v927 = vsel %vm920, %v926, 0.0
        %928 = vadd.xlane.f32.xlu0 %v927
        %v929 = vpop.xlane.xlu0 %928
        %v930 = vrcp.pop %v929
        %v931 = vmul.f32 %v929, %v930
        %v932 = vsub.f32 2.0, %v931
        %v933 = vmul.f32 %v930, %v932
        %v934 = vmul.f32 %v926, %v933
        %935 = vst [vmem:[%s457] sm:$0xff] 0.0
        %936 = vst.msk [vmem:[%s457] sm:$0xff] %vm920, %v934
        %s937 = sand.u32 %s323, 1
        %s938 = scalar_lea.sflag [#allocation3], %s937
        %s939 = sand.u32 %s323, 1
        %s940 = smul.addr %s939, 8
        %s941 = scalar_lea.vmem [#allocation2], %s940
        // Predicated region
        $region73: #{tpu_custom_call.1} parent=71 // pred_check
          %p942 = pneg %p333
        $region74: #{tpu_custom_call.1} parent=71 // pred_check_branch
          %944 = sbr.rel (%p942) target = $region76
        $region75: #{tpu_custom_call.1} parent=71 // pred_region
          %s946 = ssub.s32 128, 128
          %947 = vsyncadd %s938, %s946
          %s948 = smul.addr %s27, 128
          %s949 = scalar_lea.hbm %s13, %s948
          %s951 = sshll.u32 %s941, 4
          %s952 = int_to_ptr.vmem [resolvable:$true] %s951
          %954 = dma.vmem_to_hbm [thread:$0]  %s952, 128, %s949, %s938
        $region76: #{tpu_custom_call.1} parent=71 // pred_fallthru
          _
      $region72: #{tpu_custom_call.1} parent=5 // pred_fallthru
        _
      %p955 = scmp.le.s32.totalorder 2, %s22
      // Predicated region
      $region77: #{tpu_custom_call.1} parent=5 // pred_check
        %p956 = pneg %p955
      $region78: #{tpu_custom_call.1} parent=5 // pred_check_branch
        %958 = sbr.rel (%p956) target = $region80
      $region79: #{tpu_custom_call.1} parent=5 // pred_region
        %s959 = ssub.s32 %s22, 2
        // Predicated region
        $region81: #{tpu_custom_call.1} parent=79 // pred_check
          %p960 = pneg %p339
        $region82: #{tpu_custom_call.1} parent=79 // pred_check_branch
          %962 = sbr.rel (%p960) target = $region84
        $region83: #{tpu_custom_call.1} parent=79 // pred_region
          %s963 = sand.u32 %s324, 1
          %s964 = scalar_lea.sflag [#allocation3], %s963
          %s965 = sand.u32 %s324, 1
          %s966 = smul.addr %s965, 8
          %s967 = scalar_lea.vmem [#allocation2], %s966
          %968 = dma.done %s964, 128
        $region84: #{tpu_custom_call.1} parent=79 // pred_fallthru
          _
      $region80: #{tpu_custom_call.1} parent=5 // pred_fallthru
        _
    $region6: #{tpu_custom_call.1} parent=1 // loop_footer
      %s26 = sadd.s32 1, %s22
    $region7: #{tpu_custom_call.1} parent=1 // loop_footer_branch
      %21 = sbr.rel target = $region3
    $region8: #{tpu_custom_call.1} parent=1 // loop_exit
      _
    %969 = vsyncpa [#allocation3], 1
    %s970 = scalar_lea.sflag [#allocation3], 1
    %971 = vsyncpa %s970, 1

</llo_original>
